<compile_context>
chip_gen: v6e
topology: v6e:2x2x1
jax: 0.10.0
libtpu: 0.0.40
codegen_flags: <defaults>
</compile_context>

<pallas_src>
import jax
import jax.numpy as jnp
from jax import lax
from jax.experimental import pallas as pl
from jax.experimental.pallas import tpu as pltpu

_H1, _H2 = 64, 32          # hidden sizes fixed by the module definition
_MAX_TILE = 8192           # rows per grid step; ~0.5 KB/row live VMEM -> ~4-5 MiB


def _mlp_kernel(x_ref, w1_ref, b1_ref, w2_ref, tail_ref, o_ref):
    # Shapes per grid step (bt = batch tile):
    #   x: (bt, D) f32        w1: (64, D) cd    b1: (64, 1) cd    w2: (32, 64) cd
    #   tail: (32, 4) f32 = [b2 | w3 | b3@row0 | pad]             o: (1, bt) f32
    cd = w1_ref.dtype
    x = x_ref[...].astype(cd)                               # in-kernel cast, (bt, D)

    # Layer 1 (feature-major): contract the D axis of both operands -> (64, bt).
    # Result dtype = cd, so on bf16 chips the bias+ReLU epilogue runs packed bf16.
    h1 = lax.dot_general(w1_ref[...], x, (((1,), (1,)), ((), ())))   # (64, bt) cd
    h1 = jnp.maximum(h1 + b1_ref[...], 0)                            # bias + ReLU

    # Layer 2: (32, 64) @ (64, bt) on the MXU with f32 accumulation.
    h2 = jnp.dot(w2_ref[...], h1, preferred_element_type=jnp.float32)  # (32, bt) f32
    b2 = tail_ref[:, 0:1]                                   # (32, 1) f32
    w3 = tail_ref[:, 1:2]                                   # (32, 1) f32
    b3 = tail_ref[0:1, 2:3]                                 # (1, 1)  f32
    h2 = jnp.maximum(h2 + b2, 0.0)

    # Layer 3 (Linear(32, 1)): VPU multiply + cross-sublane (XLU) reduce -> (1, bt),
    # lane-dense for an unmasked, contiguous writeback.
    o_ref[...] = jnp.sum(h2 * w3, axis=0, keepdims=True) + b3
    # Dropout layers are identity at inference time -> intentionally omitted.


def _pack_params(params, compute_dtype):
    """params in PyTorch nn.Linear (out, in) layout:
       (w1 (64,D), b1 (64,), w2 (32,64), b2 (32,), w3 (1,32), b3 (1,))."""
    w1, b1, w2, b2, w3, b3 = params
    assert w1.shape[0] == _H1 and w2.shape == (_H2, _H1) and w3.shape == (1, _H2)
    tail = jnp.zeros((_H2, 4), jnp.float32)
    tail = tail.at[:, 0].set(b2.astype(jnp.float32))
    tail = tail.at[:, 1].set(w3[0].astype(jnp.float32))
    tail = tail.at[0, 2].set(b3[0].astype(jnp.float32))
    return (w1.astype(compute_dtype),
            b1.astype(compute_dtype).reshape(_H1, 1),
            w2.astype(compute_dtype),
            tail)


def _round_up(n, m):
    return ((n + m - 1) // m) * m


def _choose_tiling(batch, batch_tile=None):
    """Pick (batch_tile, num_tiles). Tiles are 128-row multiples up to 8192 rows;
    batches above 256 rows always get >= 2 grid steps (v7x dual-core + pipelining)."""
    if batch_tile is None:
        batch_tile = batch if batch <= 256 else pl.cdiv(batch, 2)
    bt = _round_up(min(max(batch_tile, 1), _MAX_TILE), 128)
    num_tiles = pl.cdiv(batch, bt)
    return bt, num_tiles


def wave_forecast_mlp(x, params, *, compute_dtype=jnp.bfloat16, batch_tile=None):
    """Fused forward pass. x: (B, input_dim) float32. Returns (B, 1) float32.
    compute_dtype=float32 gives a bit-accurate path (recommended on v5e)."""
    B, D = x.shape
    w1c, b1c, w2c, tail = _pack_params(params, compute_dtype)

    bt, num_tiles = _choose_tiling(B, batch_tile)
    b_pad = bt * num_tiles
    if b_pad != B:
        # Zero-pad the ragged tail tile; the extra rows are sliced off the output.
        x = jnp.pad(x, ((0, b_pad - B), (0, 0)))

    out_row = pl.pallas_call(
        _mlp_kernel,
        out_shape=jax.ShapeDtypeStruct((1, b_pad), jnp.float32),
        grid_spec=pltpu.PrefetchScalarGridSpec(
            num_scalar_prefetch=0,
            grid=(num_tiles,),
            in_specs=[
                pl.BlockSpec((bt, D), lambda i: (i, 0)),         # x tile, native layout
                pl.BlockSpec((_H1, D), lambda i: (0, 0)),        # W1 (resident)
                pl.BlockSpec((_H1, 1), lambda i: (0, 0)),        # b1 (resident)
                pl.BlockSpec((_H2, _H1), lambda i: (0, 0)),      # W2 (resident)
                pl.BlockSpec((_H2, 4), lambda i: (0, 0)),        # packed b2|w3|b3
            ],
            out_specs=pl.BlockSpec((1, bt), lambda i: (0, i)),   # lane-dense output row
        ),
        compiler_params=pltpu.CompilerParams(
            dimension_semantics=("parallel",),
            vmem_limit_bytes=32 * 1024 * 1024,
        ),
    )(x, w1c, b1c, w2c, tail)

    # (B, 1) for parity with the PyTorch module; consumers that accept (B,) or (1, B)
    # should use out_row directly to skip this small lane->sublane relayout.
    return out_row[0, :B].reshape(B, 1)


def init_params(key, input_dim):
    """nn.Linear-style init, U(-1/sqrt(fan_in), 1/sqrt(fan_in)), PyTorch (out,in) layout."""
    dims = [(input_dim, _H1), (_H1, _H2), (_H2, 1)]
    params = []
    for i, (fan_in, fan_out) in enumerate(dims):
        kw, kb = jax.random.split(jax.random.fold_in(key, i))
        bound = 1.0 / jnp.sqrt(float(fan_in))
        w = jax.random.uniform(kw, (fan_out, fan_in), jnp.float32, -bound, bound)
        b = jax.random.uniform(kb, (fan_out,), jnp.float32, -bound, bound)
        params += [w, b]
    return tuple(params)


def reference_mlp(x, params):
    w1, b1, w2, b2, w3, b3 = params
    h1 = jnp.maximum(x @ w1.T + b1, 0.0)
    h2 = jnp.maximum(h1 @ w2.T + b2, 0.0)
    return h2 @ w3.T + b3


if __name__ == "__main__":
    key = jax.random.PRNGKey(0)
    input_dim = 8
    dropout_rate = 0.2   # eval-mode identity; kept for parity with __init__

    kx, kp = jax.random.split(key)
    params = init_params(kp, input_dim)

    # Small shape consistent with the module, exact float32 path.
    x_small = jax.random.normal(kx, (16, input_dim), jnp.float32)
    ref_small = reference_mlp(x_small, params)
    out_f32 = jax.block_until_ready(
        wave_forecast_mlp(x_small, params, compute_dtype=jnp.float32))
    assert out_f32.shape == (16, 1)
    assert jnp.allclose(out_f32, ref_small, atol=1e-4, rtol=1e-4), "f32 mismatch"

    # bf16 fast path (v6e/v7x): bf16 layer-1 epilogue, f32 layer-2 accumulation.
    out_bf16 = jax.block_until_ready(wave_forecast_mlp(x_small, params))
    assert jnp.allclose(out_bf16, ref_small, atol=2e-2, rtol=2e-2), "bf16 mismatch"

    # Larger batch exercises the tiled path: B=1024 -> bt=512, grid=(2,) parallel steps.
    x_big = jax.random.normal(jax.random.fold_in(kx, 1), (1024, input_dim), jnp.float32)
    ref_big = reference_mlp(x_big, params)
    out_big = jax.block_until_ready(wave_forecast_mlp(x_big, params))
    assert out_big.shape == (1024, 1)
    assert jnp.allclose(out_big, ref_big, atol=2e-2, rtol=2e-2), "tiled bf16 mismatch"

    # Non-divisible batch exercises the zero-pad / slice path (no assert, no fallback).
    x_odd = jax.random.normal(jax.random.fold_in(kx, 2), (300, input_dim), jnp.float32)
    out_odd = jax.block_until_ready(wave_forecast_mlp(x_odd, params))
    assert out_odd.shape == (300, 1)
    assert jnp.allclose(out_odd, reference_mlp(x_odd, params),
                        atol=2e-2, rtol=2e-2), "padded-batch mismatch"

    print("KERNEL_OK")
</pallas_src>

<mosaic_0001>
module attributes {stable_mosaic.version = 11 : i64} {
  func.func @_mlp_kernel(%arg0: i32, %arg1: memref<128x8xf32, #tpu.memory_space<vmem>>, %arg2: memref<64x8xf32, #tpu.memory_space<vmem>>, %arg3: memref<64x1xf32, #tpu.memory_space<vmem>>, %arg4: memref<32x64xf32, #tpu.memory_space<vmem>>, %arg5: memref<32x4xf32, #tpu.memory_space<vmem>>, %arg6: memref<1x128xf32, #tpu.memory_space<vmem>>) attributes {dimension_semantics = [#tpu.dimension_semantics<parallel>], iteration_bounds = array<i64: 1>, scalar_prefetch = 0 : i64, scratch_operands = 0 : i64, tpu.core_type = #tpu.core_type<tc>, window_params = [{transform_indices = @transform_0, window_bounds = array<i64: 128, 8>}, {pipeline_mode = #tpu.pipeline_mode<synchronous>, transform_indices = @transform_1, window_bounds = array<i64: 64, 8>}, {pipeline_mode = #tpu.pipeline_mode<synchronous>, transform_indices = @transform_2, window_bounds = array<i64: 64, 1>}, {pipeline_mode = #tpu.pipeline_mode<synchronous>, transform_indices = @transform_3, window_bounds = array<i64: 32, 64>}, {pipeline_mode = #tpu.pipeline_mode<synchronous>, transform_indices = @transform_4, window_bounds = array<i64: 32, 4>}, {transform_indices = @transform_5, window_bounds = array<i64: 1, 128>}]} {
    %c0 = arith.constant 0 : index
    %c0_0 = arith.constant 0 : index
    %0 = vector.load %arg1[%c0, %c0_0] : memref<128x8xf32, #tpu.memory_space<vmem>>, vector<128x8xf32>
    %c0_1 = arith.constant 0 : index
    %c0_2 = arith.constant 0 : index
    %1 = vector.load %arg2[%c0_1, %c0_2] : memref<64x8xf32, #tpu.memory_space<vmem>>, vector<64x8xf32>
    %cst = arith.constant dense<0.000000e+00> : vector<64x128xf32>
    %2 = tpu.matmul %1, %0, %cst {dimension_numbers = #tpu.dot_dimension_numbers<[1], [1], [0], [0], [0, 0, 1, 0], [], []>} : vector<64x8xf32>, vector<128x8xf32>, vector<64x128xf32> -> vector<64x128xf32>
    %c0_3 = arith.constant 0 : index
    %c0_4 = arith.constant 0 : index
    %3 = vector.load %arg3[%c0_3, %c0_4] : memref<64x1xf32, #tpu.memory_space<vmem>>, vector<64x1xf32>
    %4 = vector.broadcast %3 : vector<64x1xf32> to vector<64x128xf32>
    %5 = arith.addf %2, %4 : vector<64x128xf32>
    %cst_5 = arith.constant 0.000000e+00 : f32
    %6 = vector.broadcast %cst_5 : f32 to vector<64x128xf32>
    %7 = arith.maximumf %5, %6 : vector<64x128xf32>
    %c0_6 = arith.constant 0 : index
    %c0_7 = arith.constant 0 : index
    %8 = vector.load %arg4[%c0_6, %c0_7] : memref<32x64xf32, #tpu.memory_space<vmem>>, vector<32x64xf32>
    %cst_8 = arith.constant dense<0.000000e+00> : vector<32x128xf32>
    %9 = tpu.matmul %8, %7, %cst_8 {dimension_numbers = #tpu.dot_dimension_numbers<[1], [0], [0], [1], [0, 0, 1, 1], [], []>} : vector<32x64xf32>, vector<64x128xf32>, vector<32x128xf32> -> vector<32x128xf32>
    %c0_9 = arith.constant 0 : index
    %c0_10 = arith.constant 0 : index
    %10 = vector.load %arg5[%c0_9, %c0_10] : memref<32x4xf32, #tpu.memory_space<vmem>>, vector<32x1xf32>
    %c0_11 = arith.constant 0 : index
    %c1 = arith.constant 1 : index
    %11 = vector.load %arg5[%c0_11, %c1] : memref<32x4xf32, #tpu.memory_space<vmem>>, vector<32x1xf32>
    %c0_12 = arith.constant 0 : index
    %c2 = arith.constant 2 : index
    %12 = vector.load %arg5[%c0_12, %c2] : memref<32x4xf32, #tpu.memory_space<vmem>>, vector<1x1xf32>
    %13 = vector.broadcast %10 : vector<32x1xf32> to vector<32x128xf32>
    %14 = arith.addf %9, %13 : vector<32x128xf32>
    %cst_13 = arith.constant 0.000000e+00 : f32
    %15 = vector.broadcast %cst_13 : f32 to vector<32x128xf32>
    %16 = arith.maximumf %14, %15 : vector<32x128xf32>
    %17 = vector.broadcast %11 : vector<32x1xf32> to vector<32x128xf32>
    %18 = arith.mulf %16, %17 : vector<32x128xf32>
    %cst_14 = arith.constant dense<0.000000e+00> : vector<128xf32>
    %19 = vector.multi_reduction <add>, %18, %cst_14 [0] : vector<32x128xf32> to vector<128xf32>
    %20 = vector.shape_cast %19 : vector<128xf32> to vector<1x128xf32>
    %21 = vector.broadcast %12 : vector<1x1xf32> to vector<1x128xf32>
    %22 = arith.addf %20, %21 : vector<1x128xf32>
    %c0_15 = arith.constant 0 : index
    %c0_16 = arith.constant 0 : index
    %23 = vector.load %arg6[%c0_15, %c0_16] : memref<1x128xf32, #tpu.memory_space<vmem>>, vector<1x128xf32>
    tpu.vector_store %arg6[%c0_15, %c0_16], %22 {strides = array<i32>} : memref<1x128xf32, #tpu.memory_space<vmem>>, vector<1x128xf32>,
    return
  }
  func.func @transform_0(%arg0: i32) -> (i32, i32) {
    %c0_i32 = arith.constant 0 : i32
    %c0_i32_0 = arith.constant 0 : i32
    return %arg0, %c0_i32 : i32, i32
  }
  func.func @transform_1(%arg0: i32) -> (i32, i32) {
    %c0_i32 = arith.constant 0 : i32
    %c0_i32_0 = arith.constant 0 : i32
    %c0_i32_1 = arith.constant 0 : i32
    return %c0_i32, %c0_i32_0 : i32, i32
  }
  func.func @transform_2(%arg0: i32) -> (i32, i32) {
    %c0_i32 = arith.constant 0 : i32
    %c0_i32_0 = arith.constant 0 : i32
    %c0_i32_1 = arith.constant 0 : i32
    return %c0_i32, %c0_i32_0 : i32, i32
  }
  func.func @transform_3(%arg0: i32) -> (i32, i32) {
    %c0_i32 = arith.constant 0 : i32
    %c0_i32_0 = arith.constant 0 : i32
    %c0_i32_1 = arith.constant 0 : i32
    return %c0_i32, %c0_i32_0 : i32, i32
  }
  func.func @transform_4(%arg0: i32) -> (i32, i32) {
    %c0_i32 = arith.constant 0 : i32
    %c0_i32_0 = arith.constant 0 : i32
    %c0_i32_1 = arith.constant 0 : i32
    return %c0_i32, %c0_i32_0 : i32, i32
  }
  func.func @transform_5(%arg0: i32) -> (i32, i32) {
    %c0_i32 = arith.constant 0 : i32
    %c0_i32_0 = arith.constant 0 : i32
    return %c0_i32, %arg0 : i32, i32
  }
}

</mosaic_0001>

<llo_original>
// kernel: tpu_custom_call.1
$region0: #{tpu_custom_call.1}
  #allocation0 [shape = 'u32[]', space=smem, size = 0x4, offset = 0x4, fixed_abs, tag = 'smem constant byte address 0x4 - core index']
  #allocation1 [shape = 'u32[144,128]{1,0:T(1,128)}', space=vmem, size = 0x12000, scoped, tag = 'internal scratch']
  %s0 = inlined_call_operand.vmem [shape: f32[128,8], index: 0, kind: input, shape index: {}]
  %s1 = inlined_call_operand.vmem [shape: f32[64,8], index: 1, kind: input, shape index: {}]
  %s2 = inlined_call_operand.vmem [shape: f32[64,1], index: 2, kind: input, shape index: {}]
  %s3 = inlined_call_operand.vmem [shape: f32[32,64], index: 3, kind: input, shape index: {}]
  %s4 = inlined_call_operand.vmem [shape: f32[32,4], index: 4, kind: input, shape index: {}]
  %s5 = inlined_call_operand.hbm [shape: f32[1,128], index: 5, kind: output, shape index: {}]
  %s6 = sld [smem:[#allocation0]]
  $region30: #{tpu_custom_call.1} parent=0
    _
  %s8 = ssub.s32 1, %s6
  %s9 = scalar_select 0, %s8, %s6
  $region1: #{tpu_custom_call.1} parent=0
    #allocation2 [shape = 'u8[512]{0}', space=vmem, size = 0x400, scoped, tag = 'output window, operand 0, single buffered']
    #allocation3 [shape = 's32[1]{0}', space=sflag, size = 0x4, scoped, tag = 'scoped memory for tpu_custom_call.1']
    %10 = vsyncpa [#allocation3], 0
    // Predicated region
    $region2: #{tpu_custom_call.1} parent=1 // pred_check
      _
    $region3: #{tpu_custom_call.1} parent=1 // pred_check_branch
      %12 = sbr.rel (0) target = $region5
    $region4: #{tpu_custom_call.1} parent=1 // pred_region
      _
    $region5: #{tpu_custom_call.1} parent=1 // pred_fallthru
      _
    // Predicated region
    $region6: #{tpu_custom_call.1} parent=1 // pred_check
      _
    $region7: #{tpu_custom_call.1} parent=1 // pred_check_branch
      %14 = sbr.rel (0) target = $region9
    $region8: #{tpu_custom_call.1} parent=1 // pred_region
      _
    $region9: #{tpu_custom_call.1} parent=1 // pred_fallthru
      _
    // Predicated region
    $region10: #{tpu_custom_call.1} parent=1 // pred_check
      _
    $region11: #{tpu_custom_call.1} parent=1 // pred_check_branch
      %16 = sbr.rel (0) target = $region13
    $region12: #{tpu_custom_call.1} parent=1 // pred_region
      _
    $region13: #{tpu_custom_call.1} parent=1 // pred_fallthru
      _
    // Predicated region
    $region14: #{tpu_custom_call.1} parent=1 // pred_check
      _
    $region15: #{tpu_custom_call.1} parent=1 // pred_check_branch
      %18 = sbr.rel (0) target = $region17
    $region16: #{tpu_custom_call.1} parent=1 // pred_region
      _
    $region17: #{tpu_custom_call.1} parent=1 // pred_fallthru
      _
    // Predicated region
    $region18: #{tpu_custom_call.1} parent=1 // pred_check
      _
    $region19: #{tpu_custom_call.1} parent=1 // pred_check_branch
      %20 = sbr.rel (0) target = $region21
    $region20: #{tpu_custom_call.1} parent=1 // pred_region
      _
    $region21: #{tpu_custom_call.1} parent=1 // pred_fallthru
      _
    %v21 = vld [vmem:[%s0] sm:$0xff]
    %v22 = vld [vmem:[%s0 + $0x8] sm:$0xff]
    %v23 = vld [vmem:[%s0 + $0x10] sm:$0xff]
    %v24 = vld [vmem:[%s0 + $0x18] sm:$0xff]
    %v25 = vld [vmem:[%s0 + $0x20] sm:$0xff]
    %v26 = vld [vmem:[%s0 + $0x28] sm:$0xff]
    %v27 = vld [vmem:[%s0 + $0x30] sm:$0xff]
    %v28 = vld [vmem:[%s0 + $0x38] sm:$0xff]
    %v29 = vld [vmem:[%s0 + $0x40] sm:$0xff]
    %v30 = vld [vmem:[%s0 + $0x48] sm:$0xff]
    %v31 = vld [vmem:[%s0 + $0x50] sm:$0xff]
    %v32 = vld [vmem:[%s0 + $0x58] sm:$0xff]
    %v33 = vld [vmem:[%s0 + $0x60] sm:$0xff]
    %v34 = vld [vmem:[%s0 + $0x68] sm:$0xff]
    %v35 = vld [vmem:[%s0 + $0x70] sm:$0xff]
    %v36 = vld [vmem:[%s0 + $0x78] sm:$0xff]
    %v37 = vld [vmem:[%s1] sm:$0xff]
    %v38 = vld [vmem:[%s1 + $0x8] sm:$0xff]
    %v39 = vld [vmem:[%s1 + $0x10] sm:$0xff]
    %v40 = vld [vmem:[%s1 + $0x18] sm:$0xff]
    %v41 = vld [vmem:[%s1 + $0x20] sm:$0xff]
    %v42 = vld [vmem:[%s1 + $0x28] sm:$0xff]
    %v43 = vld [vmem:[%s1 + $0x30] sm:$0xff]
    %v44 = vld [vmem:[%s1 + $0x38] sm:$0xff]
    %v45 = vld [vmem:[%s2] sm:$0xff]
    %v46 = vld [vmem:[%s2 + $0x8] sm:$0xff]
    %v47 = vld [vmem:[%s2 + $0x10] sm:$0xff]
    %v48 = vld [vmem:[%s2 + $0x18] sm:$0xff]
    %v49 = vld [vmem:[%s2 + $0x20] sm:$0xff]
    %v50 = vld [vmem:[%s2 + $0x28] sm:$0xff]
    %v51 = vld [vmem:[%s2 + $0x30] sm:$0xff]
    %v52 = vld [vmem:[%s2 + $0x38] sm:$0xff]
    %54 = vset.pattern.permute.xlu0 0
    %55 = vperm.xlu0 %54, %v45
    %v56 = vpop.permute.xlu0 %55
    %59 = vset.pattern.permute.xlu0 0
    %60 = vperm.xlu0 %59, %v46
    %v61 = vpop.permute.xlu0 %60
    %64 = vset.pattern.permute.xlu0 0
    %65 = vperm.xlu0 %64, %v47
    %v66 = vpop.permute.xlu0 %65
    %69 = vset.pattern.permute.xlu0 0
    %70 = vperm.xlu0 %69, %v48
    %v71 = vpop.permute.xlu0 %70
    %74 = vset.pattern.permute.xlu0 0
    %75 = vperm.xlu0 %74, %v49
    %v76 = vpop.permute.xlu0 %75
    %79 = vset.pattern.permute.xlu0 0
    %80 = vperm.xlu0 %79, %v50
    %v81 = vpop.permute.xlu0 %80
    %84 = vset.pattern.permute.xlu0 0
    %85 = vperm.xlu0 %84, %v51
    %v86 = vpop.permute.xlu0 %85
    %89 = vset.pattern.permute.xlu0 0
    %90 = vperm.xlu0 %89, %v52
    %v91 = vpop.permute.xlu0 %90
    %vm93 = vcmask 64512
    %v95 = vsel %vm93, %v37, 0
    %v98 = vsel %vm93, %v38, 0
    %v101 = vsel %vm93, %v39, 0
    %v104 = vsel %vm93, %v40, 0
    %v107 = vsel %vm93, %v41, 0
    %v110 = vsel %vm93, %v42, 0
    %v113 = vsel %vm93, %v43, 0
    %v116 = vsel %vm93, %v44, 0
    %v119 = vsel %vm93, %v21, 0
    %v122 = vsel %vm93, %v22, 0
    %v125 = vsel %vm93, %v23, 0
    %v128 = vsel %vm93, %v24, 0
    %v131 = vsel %vm93, %v25, 0
    %v134 = vsel %vm93, %v26, 0
    %v137 = vsel %vm93, %v27, 0
    %v140 = vsel %vm93, %v28, 0
    %v143 = vsel %vm93, %v29, 0
    %v146 = vsel %vm93, %v30, 0
    %v149 = vsel %vm93, %v31, 0
    %v152 = vsel %vm93, %v32, 0
    %v155 = vsel %vm93, %v33, 0
    %v158 = vsel %vm93, %v34, 0
    %v161 = vsel %vm93, %v35, 0
    %v164 = vsel %vm93, %v36, 0
    %166 = vmatprep.subr.mxu0 0.0
    %167 = vmatpush1.xpose.msra.mxu0 %v164
    %168 = vmatprep.subr.mxu0 0.0
    %169 = vmatpush1.xpose.msra.mxu0 %v161
    %170 = vmatprep.subr.mxu0 0.0
    %171 = vmatpush1.xpose.msra.mxu0 %v158
    %172 = vmatprep.subr.mxu0 0.0
    %173 = vmatpush1.xpose.msra.mxu0 %v155
    %174 = vmatprep.subr.mxu0 0.0
    %175 = vmatpush1.xpose.msra.mxu0 %v152
    %176 = vmatprep.subr.mxu0 0.0
    %177 = vmatpush1.xpose.msra.mxu0 %v149
    %178 = vmatprep.subr.mxu0 0.0
    %179 = vmatpush1.xpose.msra.mxu0 %v146
    %180 = vmatprep.subr.mxu0 0.0
    %181 = vmatpush1.xpose.msra.mxu0 %v143
    %182 = vmatprep.subr.mxu0 0.0
    %183 = vmatpush1.xpose.msra.mxu0 %v140
    %184 = vmatprep.subr.mxu0 0.0
    %185 = vmatpush1.xpose.msra.mxu0 %v137
    %186 = vmatprep.subr.mxu0 0.0
    %187 = vmatpush1.xpose.msra.mxu0 %v134
    %188 = vmatprep.subr.mxu0 0.0
    %189 = vmatpush1.xpose.msra.mxu0 %v131
    %190 = vmatprep.subr.mxu0 0.0
    %191 = vmatpush1.xpose.msra.mxu0 %v128
    %192 = vmatprep.subr.mxu0 0.0
    %193 = vmatpush1.xpose.msra.mxu0 %v125
    %194 = vmatprep.subr.mxu0 0.0
    %195 = vmatpush1.xpose.msra.mxu0 %v122
    %196 = vmatprep.subr.mxu0 0.0
    %197 = vmatpush1.xpose.msra.mxu0 %v119
    %198 = vmatprep.subr.mxu0 0.0
    %199 = vmatpush2.xpose.msra.mxu0 0.0
    %200 = vmatprep.subr.mxu0 0.0
    %201 = vmatpush2.xpose.msra.mxu0 0.0
    %202 = vmatprep.subr.mxu0 0.0
    %203 = vmatpush2.xpose.msra.mxu0 0.0
    %204 = vmatprep.subr.mxu0 0.0
    %205 = vmatpush2.xpose.msra.mxu0 0.0
    %206 = vmatprep.subr.mxu0 0.0
    %207 = vmatpush2.xpose.msra.mxu0 0.0
    %208 = vmatprep.subr.mxu0 0.0
    %209 = vmatpush2.xpose.msra.mxu0 0.0
    %210 = vmatprep.subr.mxu0 0.0
    %211 = vmatpush2.xpose.msra.mxu0 0.0
    %212 = vmatprep.subr.mxu0 0.0
    %213 = vmatpush2.xpose.msra.mxu0 0.0
    %214 = vmatprep.subr.mxu0 0.0
    %215 = vmatpush2.xpose.msra.mxu0 0.0
    %216 = vmatprep.subr.mxu0 0.0
    %217 = vmatpush2.xpose.msra.mxu0 0.0
    %218 = vmatprep.subr.mxu0 0.0
    %219 = vmatpush2.xpose.msra.mxu0 0.0
    %220 = vmatprep.subr.mxu0 0.0
    %221 = vmatpush2.xpose.msra.mxu0 0.0
    %222 = vmatprep.subr.mxu0 0.0
    %223 = vmatpush2.xpose.msra.mxu0 0.0
    %224 = vmatprep.subr.mxu0 0.0
    %225 = vmatpush2.xpose.msra.mxu0 0.0
    %226 = vmatprep.subr.mxu0 0.0
    %227 = vmatpush2.xpose.msra.mxu0 0.0
    %228 = vmatprep.subr.mxu0 0.0
    %229 = vmatpush2.xpose.msra.mxu0 0.0
    %230 = vmatprep.mubr.f32.mxu0 0.0
    %231 = vmatmul.mubr.f32.gmra.mxu0 %v95
    %v232 = vpop.f32.mrf.mxu0
    %v233 = vadd.f32 %v56, %v232
    %v234 = vpop.f32.mrf.mxu0
    %235 = vmatprep.mubr.f32.mxu0 0.0
    %236 = vmatmul.mubr.f32.gmra.mxu0 %v98
    %v237 = vpop.f32.mrf.mxu0
    %v238 = vadd.f32 %v61, %v237
    %v239 = vpop.f32.mrf.mxu0
    %240 = vmatprep.mubr.f32.mxu0 0.0
    %241 = vmatmul.mubr.f32.gmra.mxu0 %v101
    %v242 = vpop.f32.mrf.mxu0
    %v243 = vadd.f32 %v66, %v242
    %v244 = vpop.f32.mrf.mxu0
    %245 = vmatprep.mubr.f32.mxu0 0.0
    %246 = vmatmul.mubr.f32.gmra.mxu0 %v104
    %v247 = vpop.f32.mrf.mxu0
    %v248 = vadd.f32 %v71, %v247
    %v249 = vpop.f32.mrf.mxu0
    %250 = vmatprep.mubr.f32.mxu0 0.0
    %251 = vmatmul.mubr.f32.gmra.mxu0 %v107
    %v252 = vpop.f32.mrf.mxu0
    %v253 = vadd.f32 %v76, %v252
    %v254 = vpop.f32.mrf.mxu0
    %255 = vmatprep.mubr.f32.mxu0 0.0
    %256 = vmatmul.mubr.f32.gmra.mxu0 %v110
    %v257 = vpop.f32.mrf.mxu0
    %v258 = vadd.f32 %v81, %v257
    %v259 = vpop.f32.mrf.mxu0
    %260 = vmatprep.mubr.f32.mxu0 0.0
    %261 = vmatmul.mubr.f32.gmra.mxu0 %v113
    %v262 = vpop.f32.mrf.mxu0
    %v263 = vadd.f32 %v86, %v262
    %v264 = vpop.f32.mrf.mxu0
    %265 = vmatprep.mubr.f32.mxu0 0.0
    %266 = vmatmul.mubr.f32.gmra.mxu0 %v116
    %v267 = vpop.f32.mrf.mxu0
    %v268 = vadd.f32 %v91, %v267
    %v269 = vpop.f32.mrf.mxu0
    %270 = vdwg.mxu0
    %v271 = vmax.f32 %v233, 0.0
    %v272 = vmax.f32 %v238, 0.0
    %v273 = vmax.f32 %v243, 0.0
    %v274 = vmax.f32 %v248, 0.0
    %v275 = vmax.f32 %v253, 0.0
    %v276 = vmax.f32 %v258, 0.0
    %v277 = vmax.f32 %v263, 0.0
    %v278 = vmax.f32 %v268, 0.0
    %v279 = vld [vmem:[%s3] sm:$0xff]
    %v280 = vld [vmem:[%s3 + $0x8] sm:$0xff]
    %v281 = vld [vmem:[%s3 + $0x10] sm:$0xff]
    %v282 = vld [vmem:[%s3 + $0x18] sm:$0xff]
    %v283 = vld [vmem:[%s4] sm:$0xff]
    %v284 = vld [vmem:[%s4 + $0x8] sm:$0xff]
    %v285 = vld [vmem:[%s4 + $0x10] sm:$0xff]
    %v286 = vld [vmem:[%s4 + $0x18] sm:$0xff]
    %v287 = vld [vmem:[%s4] sm:$0x1]
    %289 = vset.pattern.permute.xlu0 0
    %290 = vperm.xlu0 %289, %v283
    %v291 = vpop.permute.xlu0 %290
    %294 = vset.pattern.permute.xlu0 0
    %295 = vperm.xlu0 %294, %v284
    %v296 = vpop.permute.xlu0 %295
    %299 = vset.pattern.permute.xlu0 0
    %300 = vperm.xlu0 %299, %v285
    %v301 = vpop.permute.xlu0 %300
    %304 = vset.pattern.permute.xlu0 0
    %305 = vperm.xlu0 %304, %v286
    %v306 = vpop.permute.xlu0 %305
    %vm308 = vcmask 523264
    %v310 = vsel %vm308, %v279, 0
    %v313 = vsel %vm308, %v280, 0
    %v316 = vsel %vm308, %v281, 0
    %v319 = vsel %vm308, %v282, 0
    %321 = vmatprep.subr.mxu0 0.0
    %322 = vmatpush1.msra.mxu0 0.0
    %323 = vmatprep.subr.mxu0 0.0
    %324 = vmatpush1.msra.mxu0 0.0
    %325 = vmatprep.subr.mxu0 0.0
    %326 = vmatpush1.msra.mxu0 0.0
    %327 = vmatprep.subr.mxu0 0.0
    %328 = vmatpush1.msra.mxu0 0.0
    %329 = vmatprep.subr.mxu0 0.0
    %330 = vmatpush1.msra.mxu0 0.0
    %331 = vmatprep.subr.mxu0 0.0
    %332 = vmatpush1.msra.mxu0 0.0
    %333 = vmatprep.subr.mxu0 0.0
    %334 = vmatpush1.msra.mxu0 0.0
    %335 = vmatprep.subr.mxu0 0.0
    %336 = vmatpush1.msra.mxu0 0.0
    %337 = vmatprep.subr.mxu0 0.0
    %338 = vmatpush1.msra.mxu0 %v278
    %339 = vmatprep.subr.mxu0 0.0
    %340 = vmatpush1.msra.mxu0 %v277
    %341 = vmatprep.subr.mxu0 0.0
    %342 = vmatpush1.msra.mxu0 %v276
    %343 = vmatprep.subr.mxu0 0.0
    %344 = vmatpush1.msra.mxu0 %v275
    %345 = vmatprep.subr.mxu0 0.0
    %346 = vmatpush1.msra.mxu0 %v274
    %347 = vmatprep.subr.mxu0 0.0
    %348 = vmatpush1.msra.mxu0 %v273
    %349 = vmatprep.subr.mxu0 0.0
    %350 = vmatpush1.msra.mxu0 %v272
    %351 = vmatprep.subr.mxu0 0.0
    %352 = vmatpush1.msra.mxu0 %v271
    %353 = vmatprep.subr.mxu0 0.0
    %354 = vmatpush2.msra.mxu0 0.0
    %355 = vmatprep.subr.mxu0 0.0
    %356 = vmatpush2.msra.mxu0 0.0
    %357 = vmatprep.subr.mxu0 0.0
    %358 = vmatpush2.msra.mxu0 0.0
    %359 = vmatprep.subr.mxu0 0.0
    %360 = vmatpush2.msra.mxu0 0.0
    %361 = vmatprep.subr.mxu0 0.0
    %362 = vmatpush2.msra.mxu0 0.0
    %363 = vmatprep.subr.mxu0 0.0
    %364 = vmatpush2.msra.mxu0 0.0
    %365 = vmatprep.subr.mxu0 0.0
    %366 = vmatpush2.msra.mxu0 0.0
    %367 = vmatprep.subr.mxu0 0.0
    %368 = vmatpush2.msra.mxu0 0.0
    %369 = vmatprep.subr.mxu0 0.0
    %370 = vmatpush2.msra.mxu0 0.0
    %371 = vmatprep.subr.mxu0 0.0
    %372 = vmatpush2.msra.mxu0 0.0
    %373 = vmatprep.subr.mxu0 0.0
    %374 = vmatpush2.msra.mxu0 0.0
    %375 = vmatprep.subr.mxu0 0.0
    %376 = vmatpush2.msra.mxu0 0.0
    %377 = vmatprep.subr.mxu0 0.0
    %378 = vmatpush2.msra.mxu0 0.0
    %379 = vmatprep.subr.mxu0 0.0
    %380 = vmatpush2.msra.mxu0 0.0
    %381 = vmatprep.subr.mxu0 0.0
    %382 = vmatpush2.msra.mxu0 0.0
    %383 = vmatprep.subr.mxu0 0.0
    %384 = vmatpush2.msra.mxu0 0.0
    %385 = vmatprep.mubr.f32.mxu0 0.0
    %386 = vmatmul.mubr.f32.gmra.mxu0 %v310
    %v387 = vpop.f32.mrf.mxu0
    %v388 = vadd.f32 %v291, %v387
    %v389 = vpop.f32.mrf.mxu0
    %390 = vmatprep.mubr.f32.mxu0 0.0
    %391 = vmatmul.mubr.f32.gmra.mxu0 %v313
    %v392 = vpop.f32.mrf.mxu0
    %v393 = vadd.f32 %v296, %v392
    %v394 = vpop.f32.mrf.mxu0
    %395 = vmatprep.mubr.f32.mxu0 0.0
    %396 = vmatmul.mubr.f32.gmra.mxu0 %v316
    %v397 = vpop.f32.mrf.mxu0
    %v398 = vadd.f32 %v301, %v397
    %v399 = vpop.f32.mrf.mxu0
    %400 = vmatprep.mubr.f32.mxu0 0.0
    %401 = vmatmul.mubr.f32.gmra.mxu0 %v319
    %v402 = vpop.f32.mrf.mxu0
    %v403 = vadd.f32 %v306, %v402
    %v404 = vpop.f32.mrf.mxu0
    %405 = vdwg.mxu0
    %v406 = vmax.f32 %v388, 0.0
    %v407 = vmax.f32 %v393, 0.0
    %v408 = vmax.f32 %v398, 0.0
    %v409 = vmax.f32 %v403, 0.0
    %410 = vset.pattern.permute.xlu0 1
    %411 = vperm.xlu0 %410, %v283
    %v412 = vpop.permute.xlu0 %411
    %414 = vset.pattern.permute.xlu0 1
    %415 = vperm.xlu0 %414, %v284
    %v416 = vpop.permute.xlu0 %415
    %418 = vset.pattern.permute.xlu0 1
    %419 = vperm.xlu0 %418, %v285
    %v420 = vpop.permute.xlu0 %419
    %422 = vset.pattern.permute.xlu0 1
    %423 = vperm.xlu0 %422, %v286
    %v424 = vpop.permute.xlu0 %423
    %v426 = vmul.f32 %v406, %v412
    %v427 = vmul.f32 %v407, %v416
    %v428 = vmul.f32 %v408, %v420
    %v429 = vmul.f32 %v409, %v424
    %v430 = vadd.f32 %v426, %v427
    %v431 = vadd.f32 %v430, %v428
    %v432 = vadd.f32 %v431, %v429
    %v433 = vrot.slane %v432, 4
    %v434 = vadd.f32 %v432, %v433
    %v435 = vrot.slane %v434, 2
    %v436 = vadd.f32 %v434, %v435
    %v437 = vrot.slane %v436, 1
    %v438 = vadd.f32 %v436, %v437
    %440 = vset.pattern.permute.xlu0 2
    %441 = vperm.xlu0 %440, %v287
    %v442 = vpop.permute.xlu0 %441
    %v444 = vadd.f32 %v438, %v442
    %445 = vst [vmem:[#allocation2] sm:$0x1] %v444
    // Predicated region
    $region22: #{tpu_custom_call.1} parent=1 // pred_check
      _
    $region23: #{tpu_custom_call.1} parent=1 // pred_check_branch
      %447 = sbr.rel (0) target = $region25
    $region24: #{tpu_custom_call.1} parent=1 // pred_region
      %s449 = ssub.s32 16, 16
      %450 = vsyncadd [#allocation3], %s449
      %s452 = sshll.u32 [#allocation2], 4
      %s453 = int_to_ptr.vmem [resolvable:$true] %s452
      %455 = dma.vmem_to_hbm [thread:$0]  %s453, 16, %s5, [#allocation3]
    $region25: #{tpu_custom_call.1} parent=1 // pred_fallthru
      _
    // Predicated region
    $region26: #{tpu_custom_call.1} parent=1 // pred_check
      _
    $region27: #{tpu_custom_call.1} parent=1 // pred_check_branch
      %457 = sbr.rel (0) target = $region29
    $region28: #{tpu_custom_call.1} parent=1 // pred_region
      %458 = dma.done [#allocation3], 16
    $region29: #{tpu_custom_call.1} parent=1 // pred_fallthru
      _
    %459 = vsyncpa [#allocation3], 1

</llo_original>
